<compile_context>
chip_gen: v5e
topology: v5e:2x2
jax: 0.10.0
libtpu: 0.0.40
codegen_flags: <defaults>
</compile_context>

<pallas_src>
import functools

import jax
import jax.numpy as jnp
from jax.experimental import pallas as pl
from jax.experimental.pallas import tpu as pltpu


_LANE = 128
_MAX_HW_BLOCK = 2048
_TILE_TARGET_BYTES = 2 * 1024 * 1024       # ~2 MiB per tile: past this, <1% gain
_VMEM_CAP_BYTES = 48 * 1024 * 1024          # headroom inside v7x's 64 MiB physical VMEM


def _exchange_kernel(x1_ref, x2_ref, o1_ref, o2_ref, *, p, c_block):
    # Tiles are (1, c_block, hw_block): channels on sublanes, flattened spatial on lanes.
    x1 = x1_ref[...]
    x2 = x2_ref[...]

    # Tiny per-block channel mask: (c_block, 1) iota + block offset, broadcast over lanes.
    c_start = pl.program_id(1) * c_block
    local_c = jax.lax.broadcasted_iota(jnp.int32, (c_block, 1), dimension=0)
    channel = local_c + c_start
    if p > 0 and (p & (p - 1)) == 0:        # power-of-two p (default p=2): cheap bitwise-and
        keep = (channel & (p - 1)) == 0
    else:
        keep = (channel % p) == 0
    keep = keep[None]                        # (1, c_block, 1) -> broadcasts over the lane axis

    o1_ref[...] = jnp.where(keep, x1, x2)    # channels with c % p == 0 keep their own features
    o2_ref[...] = jnp.where(keep, x2, x1)


def _pick_hw_block(hw_padded):
    """Largest multiple-of-128 divisor of hw_padded, capped at 2048 lanes."""
    cap = min(hw_padded, _MAX_HW_BLOCK)
    for cand in range(cap, 0, -_LANE):
        if hw_padded % cand == 0:
            return cand
    return _LANE


def _pick_blocks(c, hw_padded, itemsize):
    """Pick (c_block, hw_block): ~2 MiB tiles, dtype-aware sublane alignment, VMEM-safe."""
    hw_block = _pick_hw_block(hw_padded)
    # Sub-32-bit dtypes pack along sublanes: native sublane tile is 8 (f32),
    # 16 (bf16/f16), 32 (int8/fp8).
    min_sublane = max(1, 32 // itemsize)
    while True:
        target_c = max(1, _TILE_TARGET_BYTES // max(1, hw_block * itemsize))
        for cb in range(min(c, target_c), 0, -1):
            if c % cb == 0 and (cb % min_sublane == 0 or cb == c):
                return cb, hw_block
        # No aligned divisor fits the ~2 MiB budget (awkward / prime-ish C):
        # take the full channel dim if the double-buffered footprint (2 in + 2 out,
        # 2 buffers each) still fits comfortably, otherwise shrink the lane block.
        if 8 * c * hw_block * itemsize <= _VMEM_CAP_BYTES // 2:
            return c, hw_block
        if hw_block % (2 * _LANE) == 0:
            hw_block //= 2
            continue
        return c, hw_block  # last resort; wrapper assert guards a true VMEM OOM


def changer_channel_exchange(x1, x2, p=2):
    """Exchange channels of two NCHW features uniformly-spaced with 1:1 ratio.

    Returns (out_x1, out_x2) with the same shapes/dtypes as the inputs.
    """
    assert x1.shape == x2.shape and x1.dtype == x2.dtype
    N, C, H, W = x1.shape
    HW = H * W
    itemsize = jnp.dtype(x1.dtype).itemsize

    # Lane-dense layout: flatten spatial dims; pad the lane axis to a multiple of 128
    # so stores are unmasked full-lane vst (pad bandwidth << masked-store loss).
    hw_padded = ((HW + _LANE - 1) // _LANE) * _LANE
    x1f = x1.reshape(N, C, HW)
    x2f = x2.reshape(N, C, HW)
    if hw_padded != HW:
        pad_cfg = ((0, 0), (0, 0), (0, hw_padded - HW))
        x1f = jnp.pad(x1f, pad_cfg)
        x2f = jnp.pad(x2f, pad_cfg)

    c_block, hw_block = _pick_blocks(C, hw_padded, itemsize)

    # Keep the parallel grid balanced across v7x's 2 TensorCores: if the total number
    # of grid points is odd (or 1), split the lane axis once more.
    if (N * (C // c_block) * (hw_padded // hw_block)) % 2 == 1 and hw_block % (2 * _LANE) == 0:
        hw_block //= 2
    grid = (N, C // c_block, hw_padded // hw_block)

    # VMEM footprint: 2 inputs + 2 outputs, double-buffered.
    tile_bytes = c_block * hw_block * itemsize
    resident_bytes = 4 * 2 * tile_bytes
    vmem_limit = int(min(max(2 * resident_bytes, 16 * 1024 * 1024), _VMEM_CAP_BYTES))
    assert resident_bytes <= vmem_limit, (
        f"tile footprint {resident_bytes}B exceeds VMEM budget {vmem_limit}B "
        f"(c_block={c_block}, hw_block={hw_block})")

    total_elems = N * C * hw_padded
    total_bytes = total_elems * itemsize

    spec = pl.BlockSpec((1, c_block, hw_block), lambda n, ci, hi: (n, ci, hi))
    out_sds = jax.ShapeDtypeStruct((N, C, hw_padded), x1.dtype)

    o1, o2 = pl.pallas_call(
        functools.partial(_exchange_kernel, p=p, c_block=c_block),
        out_shape=(out_sds, out_sds),
        grid_spec=pltpu.PrefetchScalarGridSpec(
            num_scalar_prefetch=0,
            grid=grid,
            in_specs=[spec, spec],
            out_specs=[spec, spec],
        ),
        # o1 reuses x1's HBM buffer, o2 reuses x2's: per-tile read-then-write with
        # identical in/out BlockSpecs, so in-place is safe; halves peak HBM allocation.
        input_output_aliases={0: 0, 1: 1},
        compiler_params=pltpu.CompilerParams(
            dimension_semantics=("parallel", "parallel", "parallel"),
            vmem_limit_bytes=vmem_limit,
        ),
        cost_estimate=pl.CostEstimate(
            flops=2 * total_elems,           # two selects per element
            transcendentals=0,
            bytes_accessed=4 * total_bytes,  # read 2 arrays + write 2 arrays
        ),
    )(x1f, x2f)

    if hw_padded != HW:
        o1 = o1[:, :, :HW]
        o2 = o2[:, :, :HW]
    return o1.reshape(N, C, H, W), o2.reshape(N, C, H, W)


def _reference(x1, x2, p=2):
    C = x1.shape[1]
    mask = ((jnp.arange(C) % p) == 0).astype(x1.dtype)[None, :, None, None]
    out1 = mask * x1 + (1 - mask) * x2
    out2 = mask * x2 + (1 - mask) * x1
    return out1, out2


if __name__ == "__main__":
    key = jax.random.PRNGKey(0)
    k1, k2, k3, k4 = jax.random.split(key, 4)

    # Case 1: lane-dense spatial size (HW is a multiple of 128).
    N, C, H, W = 2, 4, 16, 16
    x1 = jax.random.normal(k1, (N, C, H, W), dtype=jnp.float32)
    x2 = jax.random.normal(k2, (N, C, H, W), dtype=jnp.float32)
    ref1, ref2 = _reference(x1, x2, p=2)
    jax.block_until_ready((ref1, ref2))          # materialize before the aliasing call
    out1, out2 = changer_channel_exchange(x1, x2, p=2)
    jax.block_until_ready((out1, out2))
    assert out1.shape == (N, C, H, W) and out2.shape == (N, C, H, W)
    assert jnp.allclose(out1, ref1), "out_x1 mismatch (dense case)"
    assert jnp.allclose(out2, ref2), "out_x2 mismatch (dense case)"

    # Case 2: HW not a multiple of 128 (exercises the lane-padding path).
    N2, C2, H2, W2 = 2, 6, 7, 7
    y1 = jax.random.normal(k3, (N2, C2, H2, W2), dtype=jnp.float32)
    y2 = jax.random.normal(k4, (N2, C2, H2, W2), dtype=jnp.float32)
    rref1, rref2 = _reference(y1, y2, p=2)
    jax.block_until_ready((rref1, rref2))
    p1, p2 = changer_channel_exchange(y1, y2, p=2)
    jax.block_until_ready((p1, p2))
    assert jnp.allclose(p1, rref1), "out_x1 mismatch (padded case)"
    assert jnp.allclose(p2, rref2), "out_x2 mismatch (padded case)"

    print("KERNEL_OK")
</pallas_src>

<mosaic_0001>
module attributes {stable_mosaic.version = 11 : i64} {
  func.func @_exchange_kernel(%arg0: i32, %arg1: i32, %arg2: i32, %arg3: memref<1x4x256xf32, #tpu.memory_space<vmem>>, %arg4: memref<1x4x256xf32, #tpu.memory_space<vmem>>, %arg5: memref<1x4x256xf32, #tpu.memory_space<vmem>>, %arg6: memref<1x4x256xf32, #tpu.memory_space<vmem>>) attributes {dimension_semantics = [#tpu.dimension_semantics<parallel>, #tpu.dimension_semantics<parallel>, #tpu.dimension_semantics<parallel>], iteration_bounds = array<i64: 2, 1, 1>, scalar_prefetch = 0 : i64, scratch_operands = 0 : i64, tpu.core_type = #tpu.core_type<tc>, window_params = [{transform_indices = @transform_0, window_bounds = array<i64: 1, 4, 256>}, {transform_indices = @transform_1, window_bounds = array<i64: 1, 4, 256>}, {transform_indices = @transform_2, window_bounds = array<i64: 1, 4, 256>}, {transform_indices = @transform_3, window_bounds = array<i64: 1, 4, 256>}]} {
    %c0 = arith.constant 0 : index
    %c0_0 = arith.constant 0 : index
    %c0_1 = arith.constant 0 : index
    %0 = vector.load %arg3[%c0, %c0_0, %c0_1] : memref<1x4x256xf32, #tpu.memory_space<vmem>>, vector<1x4x256xf32>
    %c0_2 = arith.constant 0 : index
    %c0_3 = arith.constant 0 : index
    %c0_4 = arith.constant 0 : index
    %1 = vector.load %arg4[%c0_2, %c0_3, %c0_4] : memref<1x4x256xf32, #tpu.memory_space<vmem>>, vector<1x4x256xf32>
    %c4_i32 = arith.constant 4 : i32
    %2 = arith.muli %arg1, %c4_i32 : i32
    %3 = tpu.iota {dimensions = array<i32: 0>} : vector<4x1xi32>
    %4 = vector.broadcast %2 : i32 to vector<4x1xi32>
    %5 = arith.addi %3, %4 : vector<4x1xi32>
    %c1_i32 = arith.constant 1 : i32
    %6 = vector.broadcast %c1_i32 : i32 to vector<4x1xi32>
    %7 = arith.andi %5, %6 : vector<4x1xi32>
    %c0_i32 = arith.constant 0 : i32
    %8 = vector.broadcast %c0_i32 : i32 to vector<4x1xi32>
    %9 = arith.cmpi eq, %7, %8 : vector<4x1xi32>
    %10 = vector.shape_cast %9 : vector<4x1xi1> to vector<1x4x1xi1>
    %11 = vector.shape_cast %10 : vector<1x4x1xi1> to vector<1x4x1xi1>
    %12 = vector.broadcast %11 : vector<1x4x1xi1> to vector<1x4x256xi1>
    %13 = arith.select %12, %0, %1 : vector<1x4x256xi1>, vector<1x4x256xf32>
    %c0_5 = arith.constant 0 : index
    %c0_6 = arith.constant 0 : index
    %c0_7 = arith.constant 0 : index
    %14 = vector.load %arg5[%c0_5, %c0_6, %c0_7] : memref<1x4x256xf32, #tpu.memory_space<vmem>>, vector<1x4x256xf32>
    tpu.vector_store %arg5[%c0_5, %c0_6, %c0_7], %13 {strides = array<i32>} : memref<1x4x256xf32, #tpu.memory_space<vmem>>, vector<1x4x256xf32>,
    %15 = vector.shape_cast %10 : vector<1x4x1xi1> to vector<1x4x1xi1>
    %16 = vector.broadcast %15 : vector<1x4x1xi1> to vector<1x4x256xi1>
    %17 = arith.select %16, %1, %0 : vector<1x4x256xi1>, vector<1x4x256xf32>
    %c0_8 = arith.constant 0 : index
    %c0_9 = arith.constant 0 : index
    %c0_10 = arith.constant 0 : index
    %18 = vector.load %arg6[%c0_8, %c0_9, %c0_10] : memref<1x4x256xf32, #tpu.memory_space<vmem>>, vector<1x4x256xf32>
    tpu.vector_store %arg6[%c0_8, %c0_9, %c0_10], %17 {strides = array<i32>} : memref<1x4x256xf32, #tpu.memory_space<vmem>>, vector<1x4x256xf32>,
    return
  }
  func.func @transform_0(%arg0: i32, %arg1: i32, %arg2: i32) -> (i32, i32, i32) {
    %c0_i32 = arith.constant 0 : i32
    return %arg0, %arg1, %arg2 : i32, i32, i32
  }
  func.func @transform_1(%arg0: i32, %arg1: i32, %arg2: i32) -> (i32, i32, i32) {
    %c0_i32 = arith.constant 0 : i32
    return %arg0, %arg1, %arg2 : i32, i32, i32
  }
  func.func @transform_2(%arg0: i32, %arg1: i32, %arg2: i32) -> (i32, i32, i32) {
    %c0_i32 = arith.constant 0 : i32
    return %arg0, %arg1, %arg2 : i32, i32, i32
  }
  func.func @transform_3(%arg0: i32, %arg1: i32, %arg2: i32) -> (i32, i32, i32) {
    %c0_i32 = arith.constant 0 : i32
    return %arg0, %arg1, %arg2 : i32, i32, i32
  }
}

</mosaic_0001>

<llo_original>
// kernel: tpu_custom_call.1
$region0: #{tpu_custom_call.1}
  #allocation0 [shape = 'u32[]', space=smem, size = 0x4, offset = 0x4, fixed_abs, tag = 'smem constant byte address 0x4 - core index']
  #allocation1 [shape = 'u32[72,128]{1,0:T(1,128)}', space=vmem, size = 0x9000, scoped, tag = 'internal scratch']
  %s0 = inlined_call_operand.hbm [shape: f32[2,4,256], index: 0, kind: input, shape index: {}, may-alias: {0,2}]
  %s1 = inlined_call_operand.hbm [shape: f32[2,4,256], index: 1, kind: input, shape index: {}, may-alias: {1,3}]
  %s2 = inlined_call_operand.hbm [shape: f32[2,4,256], index: 2, kind: output, shape index: {0}, may-alias: {0,2}]
  %s3 = inlined_call_operand.hbm [shape: f32[2,4,256], index: 3, kind: output, shape index: {1}, may-alias: {1,3}]
  %4 = xla_tuple %s2, %s3
  %s5 = sld [smem:[#allocation0]]
  $region57: #{tpu_custom_call.1} parent=0
    _
  %s7 = ssub.s32 1, %s5
  %s8 = scalar_select 0, %s7, %s5
  $region1: #{tpu_custom_call.1} parent=0
    #allocation2 [shape = 'u8[8192]{0}', space=vmem, size = 0x2000, scoped, tag = 'input window, operand 0']
    #allocation3 [shape = 's32[2]{0}', space=sflag, size = 0x8, scoped, tag = 'scoped memory for tpu_custom_call.1']
    #allocation4 [shape = 's32[2]{0}', space=sflag, size = 0x8, scoped, tag = 'scoped memory for tpu_custom_call.1']
    #allocation5 [shape = 'u8[8192]{0}', space=vmem, size = 0x2000, scoped, tag = 'input window, operand 1']
    #allocation6 [shape = 's32[2]{0}', space=sflag, size = 0x8, scoped, tag = 'scoped memory for tpu_custom_call.1']
    #allocation7 [shape = 'u8[8192]{0}', space=vmem, size = 0x2000, scoped, tag = 'output window, operand 0']
    #allocation8 [shape = 'u8[8192]{0}', space=vmem, size = 0x2000, scoped, tag = 'output window, operand 1']
    #allocation9 [shape = 's32[2]{0}', space=sflag, size = 0x8, scoped, tag = 'scoped memory for tpu_custom_call.1']
    %9 = vsyncpa [#allocation3], 0
    %s10 = scalar_lea.sflag [#allocation3], 1
    %11 = vsyncpa %s10, 0
    %12 = vsyncpa [#allocation6], 0
    %s13 = scalar_lea.sflag [#allocation6], 1
    %14 = vsyncpa %s13, 0
    %15 = vsyncpa [#allocation4], 0
    %s16 = scalar_lea.sflag [#allocation4], 1
    %17 = vsyncpa %s16, 0
    %18 = vsyncpa [#allocation9], 0
    %s19 = scalar_lea.sflag [#allocation9], 1
    %20 = vsyncpa %s19, 0
    loop: start=0, step=1, limit=4
    $region2: #{tpu_custom_call.1} parent=1 // loop_pre_header
      _
    $region3: #{tpu_custom_call.1} parent=1 // loop_header
      %s22 = sphi 0, %s26
      %p23 = scmp.ge.s32.totalorder %s22, 4
      %s29 = sphi 0, %s48
      %s30 = sphi 0, %s44
      %s31 = sphi 0, %s40
      %s32 = sphi 0, %s29
      %s33 = sphi 0, %s30
      %s34 = sphi 0, %s31
      %s35 = sphi 0, %s32
      %s36 = sphi 0, %s33
      %s37 = sphi 0, %s34
      %s55 = sphi 0, %s57
      %s58 = sphi 0, %s55
      %s59 = sphi 0, %s58
      %s75 = sphi 0, %s59
      %s85 = sphi 0, %s87
      %s88 = sphi 0, %s85
      %s89 = sphi 0, %s88
      %s105 = sphi 0, %s89
      %s115 = sphi 0, %s117
      %s118 = sphi 0, %s115
      %s119 = sphi 0, %s118
      %s135 = sphi 0, %s119
      %s145 = sphi 0, %s147
      %s148 = sphi 0, %s145
      %s149 = sphi 0, %s148
      %s165 = sphi 0, %s149
    $region4: #{tpu_custom_call.1} parent=1 // loop_header_branch
      %25 = sbr.rel (%p23) target = $region8
    $region5: #{tpu_custom_call.1} parent=1 // loop_body
      %s27 = ssub.s32 %s22, 1
      %s28 = ssub.s32 %s22, 2
      %s38 = sadd.s32 1, %s31
      %p39 = scmp.ge.s32.totalorder %s38, 1
      %s40 = scalar_select %p39, 0, %s38
      %s41 = sadd.s32 1, %s30
      %s42 = scalar_select %p39, %s41, %s30
      %p43 = scmp.ge.s32.totalorder %s42, 1
      %s44 = scalar_select %p43, 0, %s42
      %s45 = sadd.s32 1, %s29
      %s46 = scalar_select %p43, %s45, %s29
      %p47 = scmp.ge.s32.totalorder %s46, 2
      %s48 = scalar_select %p47, 0, %s46
      %s49 = ssub.s32 %s29, %s48
      %s50 = ssub.s32 %s30, %s44
      %s51 = sor.u32 %s49, %s50
      %s52 = ssub.s32 %s31, %s40
      %s53 = sor.u32 %s51, %s52
      %p54 = scmp.eq.s32.totalorder %s53, 0
      %s56 = sadd.s32 %s55, 1
      %s57 = scalar_select %p54, %s55, %s56
      %p60 = pneg %p54
      %p61 = scmp.eq.s32.totalorder %s22, 1
      %p62 = por %p60, %p61
      %p63 = scmp.ne.s32.totalorder %s55, %s58
      %p64 = scmp.eq.s32.totalorder %s22, 0
      %p65 = por %p63, %p64
      %p66 = scmp.ne.s32.totalorder %s55, %s58
      %p67 = scmp.eq.s32.totalorder %s27, 1
      %p68 = por %p66, %p67
      %p69 = scmp.ne.s32.totalorder %s58, %s59
      %p70 = scmp.eq.s32.totalorder %s27, 0
      %p71 = por %p69, %p70
      %p72 = scmp.ne.s32.totalorder %s58, %s59
      %p73 = scmp.eq.s32.totalorder %s28, 1
      %p74 = por %p72, %p73
      %p76 = scmp.ne.s32.totalorder %s59, %s75
      %p77 = scmp.eq.s32.totalorder %s28, 0
      %p78 = por %p76, %p77
      %s79 = ssub.s32 %s29, %s48
      %s80 = ssub.s32 %s30, %s44
      %s81 = sor.u32 %s79, %s80
      %s82 = ssub.s32 %s31, %s40
      %s83 = sor.u32 %s81, %s82
      %p84 = scmp.eq.s32.totalorder %s83, 0
      %s86 = sadd.s32 %s85, 1
      %s87 = scalar_select %p84, %s85, %s86
      %p90 = pneg %p84
      %p91 = scmp.eq.s32.totalorder %s22, 1
      %p92 = por %p90, %p91
      %p93 = scmp.ne.s32.totalorder %s85, %s88
      %p94 = scmp.eq.s32.totalorder %s22, 0
      %p95 = por %p93, %p94
      %p96 = scmp.ne.s32.totalorder %s85, %s88
      %p97 = scmp.eq.s32.totalorder %s27, 1
      %p98 = por %p96, %p97
      %p99 = scmp.ne.s32.totalorder %s88, %s89
      %p100 = scmp.eq.s32.totalorder %s27, 0
      %p101 = por %p99, %p100
      %p102 = scmp.ne.s32.totalorder %s88, %s89
      %p103 = scmp.eq.s32.totalorder %s28, 1
      %p104 = por %p102, %p103
      %p106 = scmp.ne.s32.totalorder %s89, %s105
      %p107 = scmp.eq.s32.totalorder %s28, 0
      %p108 = por %p106, %p107
      %s109 = ssub.s32 %s29, %s48
      %s110 = ssub.s32 %s30, %s44
      %s111 = sor.u32 %s109, %s110
      %s112 = ssub.s32 %s31, %s40
      %s113 = sor.u32 %s111, %s112
      %p114 = scmp.eq.s32.totalorder %s113, 0
      %s116 = sadd.s32 %s115, 1
      %s117 = scalar_select %p114, %s115, %s116
      %p120 = pneg %p114
      %p121 = scmp.eq.s32.totalorder %s22, 1
      %p122 = por %p120, %p121
      %p123 = scmp.ne.s32.totalorder %s115, %s118
      %p124 = scmp.eq.s32.totalorder %s22, 0
      %p125 = por %p123, %p124
      %p126 = scmp.ne.s32.totalorder %s115, %s118
      %p127 = scmp.eq.s32.totalorder %s27, 1
      %p128 = por %p126, %p127
      %p129 = scmp.ne.s32.totalorder %s118, %s119
      %p130 = scmp.eq.s32.totalorder %s27, 0
      %p131 = por %p129, %p130
      %p132 = scmp.ne.s32.totalorder %s118, %s119
      %p133 = scmp.eq.s32.totalorder %s28, 1
      %p134 = por %p132, %p133
      %p136 = scmp.ne.s32.totalorder %s119, %s135
      %p137 = scmp.eq.s32.totalorder %s28, 0
      %p138 = por %p136, %p137
      %s139 = ssub.s32 %s29, %s48
      %s140 = ssub.s32 %s30, %s44
      %s141 = sor.u32 %s139, %s140
      %s142 = ssub.s32 %s31, %s40
      %s143 = sor.u32 %s141, %s142
      %p144 = scmp.eq.s32.totalorder %s143, 0
      %s146 = sadd.s32 %s145, 1
      %s147 = scalar_select %p144, %s145, %s146
      %p150 = pneg %p144
      %p151 = scmp.eq.s32.totalorder %s22, 1
      %p152 = por %p150, %p151
      %p153 = scmp.ne.s32.totalorder %s145, %s148
      %p154 = scmp.eq.s32.totalorder %s22, 0
      %p155 = por %p153, %p154
      %p156 = scmp.ne.s32.totalorder %s145, %s148
      %p157 = scmp.eq.s32.totalorder %s27, 1
      %p158 = por %p156, %p157
      %p159 = scmp.ne.s32.totalorder %s148, %s149
      %p160 = scmp.eq.s32.totalorder %s27, 0
      %p161 = por %p159, %p160
      %p162 = scmp.ne.s32.totalorder %s148, %s149
      %p163 = scmp.eq.s32.totalorder %s28, 1
      %p164 = por %p162, %p163
      %p166 = scmp.ne.s32.totalorder %s149, %s165
      %p167 = scmp.eq.s32.totalorder %s28, 0
      %p168 = por %p166, %p167
      %p169 = scmp.le.s32.totalorder 1, %s22
      %p170 = scmp.lt.s32.totalorder %s22, 3
      %p171 = pnand %p169, %p170
      %p172 = pneg %p171
      // Predicated region
      $region9: #{tpu_custom_call.1} parent=5 // pred_check
        _
      $region10: #{tpu_custom_call.1} parent=5 // pred_check_branch
        %174 = sbr.rel (%p171) target = $region12
      $region11: #{tpu_custom_call.1} parent=5 // pred_region
        %s175 = ssub.s32 %s22, 1
      $region12: #{tpu_custom_call.1} parent=5 // pred_fallthru
        _
      %p176 = scmp.lt.s32.totalorder %s22, 2
      // Predicated region
      $region13: #{tpu_custom_call.1} parent=5 // pred_check
        %p177 = pneg %p176
      $region14: #{tpu_custom_call.1} parent=5 // pred_check_branch
        %179 = sbr.rel (%p177) target = $region16
      $region15: #{tpu_custom_call.1} parent=5 // pred_region
        // Predicated region
        $region17: #{tpu_custom_call.1} parent=15 // pred_check
          %p180 = pneg %p65
        $region18: #{tpu_custom_call.1} parent=15 // pred_check_branch
          %182 = sbr.rel (%p180) target = $region20
        $region19: #{tpu_custom_call.1} parent=15 // pred_region
          %s183 = sand.u32 %s55, 1
          %s184 = scalar_lea.sflag [#allocation3], %s183
          %s185 = sand.u32 %s55, 1
          %s186 = smul.addr %s185, 8
          %s187 = scalar_lea.vmem [#allocation2], %s186
          %s188 = smul.u32 2, %s31
          %190 = vsyncadd %s184, 0
          %s191 = smul.addr %s30, 2
          %s192 = sadd.s32 %s188, %s191
          %s193 = smul.addr %s29, 2
          %s194 = sadd.s32 %s192, %s193
          %s195 = smul.addr %s194, 4
          %s196 = scalar_lea.hbm %s0, %s195
          %s198 = sshll.u32 %s196, 4
          %s199 = int_to_ptr.hbm [resolvable:$true] %s198
          %s200 = sshll.u32 %s187, 4
          %s201 = int_to_ptr.vmem [resolvable:$true] %s200
          %203 = dma.hbm_to_vmem [thread:$0]  %s199, 128, %s201, %s184
        $region20: #{tpu_custom_call.1} parent=15 // pred_fallthru
          _
        // Predicated region
        $region21: #{tpu_custom_call.1} parent=15 // pred_check
          %p204 = pneg %p95
        $region22: #{tpu_custom_call.1} parent=15 // pred_check_branch
          %206 = sbr.rel (%p204) target = $region24
        $region23: #{tpu_custom_call.1} parent=15 // pred_region
          %s207 = sand.u32 %s85, 1
          %s208 = scalar_lea.sflag [#allocation6], %s207
          %s209 = sand.u32 %s85, 1
          %s210 = smul.addr %s209, 8
          %s211 = scalar_lea.vmem [#allocation5], %s210
          %s212 = smul.u32 2, %s31
          %214 = vsyncadd %s208, 0
          %s215 = smul.addr %s30, 2
          %s216 = sadd.s32 %s212, %s215
          %s217 = smul.addr %s29, 2
          %s218 = sadd.s32 %s216, %s217
          %s219 = smul.addr %s218, 4
          %s220 = scalar_lea.hbm %s1, %s219
          %s222 = sshll.u32 %s220, 4
          %s223 = int_to_ptr.hbm [resolvable:$true] %s222
          %s224 = sshll.u32 %s211, 4
          %s225 = int_to_ptr.vmem [resolvable:$true] %s224
          %227 = dma.hbm_to_vmem [thread:$0]  %s223, 128, %s225, %s208
        $region24: #{tpu_custom_call.1} parent=15 // pred_fallthru
          _
      $region16: #{tpu_custom_call.1} parent=5 // pred_fallthru
        _
      %p228 = scmp.le.s32.totalorder 1, %s22
      %p229 = scmp.lt.s32.totalorder %s22, 3
      %p230 = pnand %p228, %p229
      %p231 = pneg %p230
      // Predicated region
      $region25: #{tpu_custom_call.1} parent=5 // pred_check
        _
      $region26: #{tpu_custom_call.1} parent=5 // pred_check_branch
        %233 = sbr.rel (%p230) target = $region28
      $region27: #{tpu_custom_call.1} parent=5 // pred_region
        %s234 = ssub.s32 %s22, 1
        %s235 = sand.u32 %s58, 1
        %s236 = scalar_lea.sflag [#allocation3], %s235
        %s237 = sand.u32 %s58, 1
        %s238 = smul.addr %s237, 8
        %s239 = scalar_lea.vmem [#allocation2], %s238
        // Predicated region
        $region29: #{tpu_custom_call.1} parent=27 // pred_check
          %p240 = pneg %p71
        $region30: #{tpu_custom_call.1} parent=27 // pred_check_branch
          %242 = sbr.rel (%p240) target = $region32
        $region31: #{tpu_custom_call.1} parent=27 // pred_region
          %244 = dma.done %s236, 128
        $region32: #{tpu_custom_call.1} parent=27 // pred_fallthru
          _
        %s245 = sand.u32 %s88, 1
        %s246 = scalar_lea.sflag [#allocation6], %s245
        %s247 = sand.u32 %s88, 1
        %s248 = smul.addr %s247, 8
        %s249 = scalar_lea.vmem [#allocation5], %s248
        // Predicated region
        $region33: #{tpu_custom_call.1} parent=27 // pred_check
          %p250 = pneg %p101
        $region34: #{tpu_custom_call.1} parent=27 // pred_check_branch
          %252 = sbr.rel (%p250) target = $region36
        $region35: #{tpu_custom_call.1} parent=27 // pred_region
          %254 = dma.done %s246, 128
        $region36: #{tpu_custom_call.1} parent=27 // pred_fallthru
          _
        %s255 = sand.u32 %s58, 1
        %s256 = scalar_lea.sflag [#allocation3], %s255
        %s257 = sand.u32 %s58, 1
        %s258 = smul.addr %s257, 8
        %s259 = scalar_lea.vmem [#allocation2], %s258
        %p260 = pneg %p71
        %p261 = pneg %p68
        %s262 = sand.u32 %s88, 1
        %s263 = scalar_lea.sflag [#allocation6], %s262
        %s264 = sand.u32 %s88, 1
        %s265 = smul.addr %s264, 8
        %s266 = scalar_lea.vmem [#allocation5], %s265
        %p267 = pneg %p101
        %p268 = pneg %p98
        %p269 = pneg %p131
        %p270 = pneg %p128
        %s271 = sand.u32 %s118, 1
        %s272 = scalar_lea.sflag [#allocation4], %s271
        %s273 = sand.u32 %s118, 1
        %s274 = smul.addr %s273, 8
        %s275 = scalar_lea.vmem [#allocation7], %s274
        %p276 = pneg %p161
        %p277 = pneg %p158
        %s278 = sand.u32 %s148, 1
        %s279 = scalar_lea.sflag [#allocation9], %s278
        %s280 = sand.u32 %s148, 1
        %s281 = smul.addr %s280, 8
        %s282 = scalar_lea.vmem [#allocation8], %s281
        %s283 = smul.u32 2, %s34
        %s284 = smul.u32 2, %s34
        %s285 = smul.u32 2, %s34
        %s286 = smul.u32 2, %s34
        %v287 = vld [vmem:[%s239] sm:$0xff]
        %v288 = vld [vmem:[%s249] sm:$0xff]
        %s289 = smul.u32 %s33, 4
        %v290 = vlaneseq
        %v291 = vshrl.u32 %v290, 7
        %v292 = vstv %s289
        %v293 = vadd.s32 %v291, %v292
        %v294 = vand.u32 %v293, 1
        %vm295 = vcmp.eq.s32.totalorder %v294, 0
        %v296 = vsel %vm295, 1, 0
        %vm297 = vcmp.eq.s32.totalorder %v296, 1
        %299 = vst [vmem:[#allocation1] ss:$2 sm:$0xff] %v287
        %v300 = vld.sshfl [vmem:[#allocation1] sm:$0xff pattern:$0x75316420]
        %v301 = vld.sshfl [vmem:[#allocation1 + $0x8] sm:$0xff pattern:$0x75316420]
        %305 = vst [vmem:[#allocation1] ss:$2 sm:$0xff] %v288
        %v306 = vld.sshfl [vmem:[#allocation1] sm:$0xff pattern:$0x75316420]
        %v307 = vld.sshfl [vmem:[#allocation1 + $0x8] sm:$0xff pattern:$0x75316420]
        %v310 = vsel %vm297, %v300, %v306
        %v311 = vsel %vm297, %v301, %v307
        %v314 = vrot.slane %v311, 4
        %vm315 = vcmask 1043456
        %v316 = vsel %vm315, %v310, %v314
        %318 = vst [vmem:[%s275] sm:$0xff] %v316
        %319 = vst [vmem:[#allocation1] ss:$2 sm:$0xff] %v288
        %v320 = vld.sshfl [vmem:[#allocation1] sm:$0xff pattern:$0x75316420]
        %v321 = vld.sshfl [vmem:[#allocation1 + $0x8] sm:$0xff pattern:$0x75316420]
        %324 = vst [vmem:[#allocation1] ss:$2 sm:$0xff] %v287
        %v325 = vld.sshfl [vmem:[#allocation1] sm:$0xff pattern:$0x75316420]
        %v326 = vld.sshfl [vmem:[#allocation1 + $0x8] sm:$0xff pattern:$0x75316420]
        %v329 = vsel %vm297, %v320, %v325
        %v330 = vsel %vm297, %v321, %v326
        %v333 = vrot.slane %v330, 4
        %v334 = vsel %vm315, %v329, %v333
        %336 = vst [vmem:[%s282] sm:$0xff] %v334
        %s337 = sand.u32 %s118, 1
        %s338 = scalar_lea.sflag [#allocation4], %s337
        %s339 = sand.u32 %s118, 1
        %s340 = smul.addr %s339, 8
        %s341 = scalar_lea.vmem [#allocation7], %s340
        %s342 = sand.u32 %s148, 1
        %s343 = scalar_lea.sflag [#allocation9], %s342
        %s344 = sand.u32 %s148, 1
        %s345 = smul.addr %s344, 8
        %s346 = scalar_lea.vmem [#allocation8], %s345
        // Predicated region
        $region37: #{tpu_custom_call.1} parent=27 // pred_check
          %p347 = pneg %p128
        $region38: #{tpu_custom_call.1} parent=27 // pred_check_branch
          %349 = sbr.rel (%p347) target = $region40
        $region39: #{tpu_custom_call.1} parent=27 // pred_region
          %s350 = smul.u32 2, %s34
          %352 = vsyncadd %s338, 0
          %s353 = smul.addr %s33, 2
          %s354 = sadd.s32 %s350, %s353
          %s355 = smul.addr %s32, 2
          %s356 = sadd.s32 %s354, %s355
          %s357 = smul.addr %s356, 4
          %s358 = scalar_lea.hbm %s2, %s357
          %s360 = sshll.u32 %s341, 4
          %s361 = int_to_ptr.vmem [resolvable:$true] %s360
          %s362 = sshll.u32 %s358, 4
          %s363 = int_to_ptr.hbm [resolvable:$true] %s362
          %365 = dma.vmem_to_hbm [thread:$0]  %s361, 128, %s363, %s338
        $region40: #{tpu_custom_call.1} parent=27 // pred_fallthru
          _
        // Predicated region
        $region41: #{tpu_custom_call.1} parent=27 // pred_check
          %p366 = pneg %p158
        $region42: #{tpu_custom_call.1} parent=27 // pred_check_branch
          %368 = sbr.rel (%p366) target = $region44
        $region43: #{tpu_custom_call.1} parent=27 // pred_region
          %s369 = smul.u32 2, %s34
          %371 = vsyncadd %s343, 0
          %s372 = smul.addr %s33, 2
          %s373 = sadd.s32 %s369, %s372
          %s374 = smul.addr %s32, 2
          %s375 = sadd.s32 %s373, %s374
          %s376 = smul.addr %s375, 4
          %s377 = scalar_lea.hbm %s3, %s376
          %s379 = sshll.u32 %s346, 4
          %s380 = int_to_ptr.vmem [resolvable:$true] %s379
          %s381 = sshll.u32 %s377, 4
          %s382 = int_to_ptr.hbm [resolvable:$true] %s381
          %384 = dma.vmem_to_hbm [thread:$0]  %s380, 128, %s382, %s343
        $region44: #{tpu_custom_call.1} parent=27 // pred_fallthru
          _
      $region28: #{tpu_custom_call.1} parent=5 // pred_fallthru
        _
      %p385 = scmp.le.s32.totalorder 2, %s22
      // Predicated region
      $region45: #{tpu_custom_call.1} parent=5 // pred_check
        %p386 = pneg %p385
      $region46: #{tpu_custom_call.1} parent=5 // pred_check_branch
        %388 = sbr.rel (%p386) target = $region48
      $region47: #{tpu_custom_call.1} parent=5 // pred_region
        %s389 = ssub.s32 %s22, 2
        // Predicated region
        $region49: #{tpu_custom_call.1} parent=47 // pred_check
          %p390 = pneg %p134
        $region50: #{tpu_custom_call.1} parent=47 // pred_check_branch
          %392 = sbr.rel (%p390) target = $region52
        $region51: #{tpu_custom_call.1} parent=47 // pred_region
          %s393 = sand.u32 %s119, 1
          %s394 = scalar_lea.sflag [#allocation4], %s393
          %s395 = sand.u32 %s119, 1
          %s396 = smul.addr %s395, 8
          %s397 = scalar_lea.vmem [#allocation7], %s396
          %399 = dma.done %s394, 128
        $region52: #{tpu_custom_call.1} parent=47 // pred_fallthru
          _
        // Predicated region
        $region53: #{tpu_custom_call.1} parent=47 // pred_check
          %p400 = pneg %p164
        $region54: #{tpu_custom_call.1} parent=47 // pred_check_branch
          %402 = sbr.rel (%p400) target = $region56
        $region55: #{tpu_custom_call.1} parent=47 // pred_region
          %s403 = sand.u32 %s149, 1
          %s404 = scalar_lea.sflag [#allocation9], %s403
          %s405 = sand.u32 %s149, 1
          %s406 = smul.addr %s405, 8
          %s407 = scalar_lea.vmem [#allocation8], %s406
          %409 = dma.done %s404, 128
        $region56: #{tpu_custom_call.1} parent=47 // pred_fallthru
          _
      $region48: #{tpu_custom_call.1} parent=5 // pred_fallthru
        _
    $region6: #{tpu_custom_call.1} parent=1 // loop_footer
      %s26 = sadd.s32 1, %s22
    $region7: #{tpu_custom_call.1} parent=1 // loop_footer_branch
      %21 = sbr.rel target = $region3
    $region8: #{tpu_custom_call.1} parent=1 // loop_exit
      _
    %410 = vsyncpa [#allocation3], 1
    %s411 = scalar_lea.sflag [#allocation3], 1
    %412 = vsyncpa %s411, 1
    %413 = vsyncpa [#allocation6], 1
    %s414 = scalar_lea.sflag [#allocation6], 1
    %415 = vsyncpa %s414, 1
    %416 = vsyncpa [#allocation4], 1
    %s417 = scalar_lea.sflag [#allocation4], 1
    %418 = vsyncpa %s417, 1
    %419 = vsyncpa [#allocation9], 1
    %s420 = scalar_lea.sflag [#allocation9], 1
    %421 = vsyncpa %s420, 1

</llo_original>
